<compile_context>
chip_gen: v6e
topology: v6e:2x2x1
jax: 0.10.0
libtpu: 0.0.40
codegen_flags: <defaults>
</compile_context>

<pallas_src>
import jax
import jax.numpy as jnp
import numpy as np
from jax.experimental import pallas as pl
from jax.experimental.pallas import tpu as pltpu


def _gather_kernel(perm_ref, feat_ref, x_ref):
    """Gather-only kernel; G graphs per grid step.

    perm_ref : (G, N, 1) i32 VMEM -- node_perm as a sublane column per graph
    feat_ref : (G, N, D) f32 VMEM -- feature tables in storage order
    x_ref    : (G, N, D) f32 VMEM -- gathered node features (torch.stack order)
    """
    g, n, _ = feat_ref.shape

    # x[g, i] = features[g, perm[g, i]] as a batched one-hot MXU matmul:
    #   onehot[g, i, k] = (perm[g, i] == k);  x = onehot @ features  (per graph)
    # precision=HIGHEST keeps the f32 values exact through the MXU (0/1 weights,
    # single nonzero per output row -> bit-exact gather).
    # NOTE: perm entries outside [0, N) silently yield an all-zero row (no
    # runtime bounds check in VMEM), unlike the PyTorch reference.
    perm = perm_ref[...]                                            # (G, N, 1)
    col = jax.lax.broadcasted_iota(jnp.int32, (g, n, n), 2)         # (G, N, N)
    onehot = (perm == col).astype(feat_ref.dtype)                   # (G, N, N)
    x_ref[...] = jnp.einsum(
        "gik,gkd->gid",
        onehot,
        feat_ref[...],
        preferred_element_type=jnp.float32,
        precision=jax.lax.Precision.HIGHEST,
    ).astype(x_ref.dtype)


def _pick_graphs_per_block(b, n, d):
    """Largest divisor of b under a conservative VMEM budget, keeping >= 2 grid
    steps (when b >= 2) so both v7x TensorCores get work."""
    budget = 4 << 20  # per-block working-set target; well under scoped VMEM
    # feat in + x out (double-buffered by the pipeline) + lane-padded perm column
    per_graph = 2 * (2 * n * d * 4) + (((n + 7) // 8) * 8) * 128 * 4
    max_g = max(1, budget // max(per_graph, 1))
    best = 1
    for g in range(1, b + 1):
        if b % g != 0 or g > max_g:
            continue
        if b >= 2 and b // g < 2:
            continue
        best = g
    return best


def graph_to_data_batched(features, node_perm, edges, graphs_per_block=None):
    """features [B,N,D] f32, node_perm [B,N] i32, edges [B,E,2] i32
    -> x [B,N,D] f32, edge_index [B,2,2E] i32."""
    b, n, d = features.shape
    e = edges.shape[1]

    g = graphs_per_block or _pick_graphs_per_block(b, n, d)
    assert b % g == 0, "graphs_per_block must divide batch size"

    perm_col = node_perm.astype(jnp.int32).reshape(b, n, 1)          # (B, N, 1)

    cost = pl.CostEstimate(
        flops=2 * b * n * n * d,
        transcendentals=0,
        bytes_accessed=(2 * b * n * d * 4) + b * n * 4,
    )

    x = pl.pallas_call(
        _gather_kernel,
        grid=(b // g,),
        in_specs=[
            pl.BlockSpec((g, n, 1), lambda i: (i, 0, 0)),            # perm  -> VMEM
            pl.BlockSpec((g, n, d), lambda i: (i, 0, 0)),            # feats -> VMEM
        ],
        out_specs=pl.BlockSpec((g, n, d), lambda i: (i, 0, 0)),      # x
        out_shape=jax.ShapeDtypeStruct((b, n, d), features.dtype),
        compiler_params=pltpu.CompilerParams(
            dimension_semantics=("parallel",),                       # v7x: 2 TCs
        ),
        cost_estimate=cost,
    )(perm_col, features)

    # edge_index is pure copy/permute with zero compute: build it in XLA.
    # For each edge (u, v) emit columns (u, v) then (v, u), interleaved.
    edges_i32 = edges.astype(jnp.int32)                              # (B, E, 2)
    fwd = jnp.swapaxes(edges_i32, 1, 2)                              # (B, 2, E) rows (u, v)
    rev = jnp.swapaxes(edges_i32[..., ::-1], 1, 2)                   # (B, 2, E) rows (v, u)
    edge_index = jnp.stack([fwd, rev], axis=-1).reshape(b, 2, 2 * e)

    return x, edge_index


def graph_to_data(features, node_perm, edges):
    """Single-graph convenience wrapper (matches the module's per-text forward)."""
    x, edge_index = graph_to_data_batched(
        features[None], node_perm[None], edges[None]
    )
    return x[0], edge_index[0]


if __name__ == "__main__":
    B, N, D, E = 2, 8, 128, 8

    key = jax.random.PRNGKey(0)
    k_feat, k_perm = jax.random.split(key)

    # "gow_model(text)" output, represented numerically (deterministic).
    features = jax.random.normal(k_feat, (B, N, D), dtype=jnp.float32)
    perm_keys = jax.random.split(k_perm, B)
    node_perm = jnp.stack(
        [jax.random.permutation(k, N) for k in perm_keys]
    ).astype(jnp.int32)
    base = jnp.arange(E, dtype=jnp.int32)
    edges = jnp.stack(
        [jnp.stack([(base + b) % N, (base + b + 1) % N], axis=1) for b in range(B)]
    )  # [B, E, 2], shifted cycle graphs

    x, edge_index = graph_to_data_batched(features, node_perm, edges)
    jax.block_until_ready((x, edge_index))

    # Also exercise the single-graph path.
    x0, ei0 = graph_to_data(features[0], node_perm[0], edges[0])
    jax.block_until_ready((x0, ei0))

    # Reference (plain numpy) check of the forward semantics.
    feat_np = np.asarray(features)
    perm_np = np.asarray(node_perm)
    edges_np = np.asarray(edges)

    for bi in range(B):
        x_ref = feat_np[bi][perm_np[bi]]
        ei_ref = np.zeros((2, 2 * E), dtype=np.int32)
        for i, (u, v) in enumerate(edges_np[bi]):
            ei_ref[0, 2 * i], ei_ref[1, 2 * i] = u, v
            ei_ref[0, 2 * i + 1], ei_ref[1, 2 * i + 1] = v, u
        assert np.allclose(np.asarray(x[bi]), x_ref), "node feature gather mismatch"
        assert np.array_equal(np.asarray(edge_index[bi]), ei_ref), "edge_index mismatch"

    assert np.allclose(np.asarray(x0), feat_np[0][perm_np[0]])
    assert np.array_equal(np.asarray(ei0), np.asarray(edge_index[0]))

    print("KERNEL_OK")
</pallas_src>

<mosaic_0001>
module attributes {stable_mosaic.version = 11 : i64} {
  func.func @_gather_kernel(%arg0: i32, %arg1: memref<1x8x1xi32, #tpu.memory_space<vmem>>, %arg2: memref<1x8x128xf32, #tpu.memory_space<vmem>>, %arg3: memref<1x8x128xf32, #tpu.memory_space<vmem>>) attributes {dimension_semantics = [#tpu.dimension_semantics<parallel>], iteration_bounds = array<i64: 2>, scalar_prefetch = 0 : i64, scratch_operands = 0 : i64, tpu.core_type = #tpu.core_type<tc>, window_params = [{transform_indices = @transform_0, window_bounds = array<i64: 1, 8, 1>}, {transform_indices = @transform_1, window_bounds = array<i64: 1, 8, 128>}, {transform_indices = @transform_2, window_bounds = array<i64: 1, 8, 128>}]} {
    %c0 = arith.constant 0 : index
    %c0_0 = arith.constant 0 : index
    %c0_1 = arith.constant 0 : index
    %0 = vector.load %arg1[%c0, %c0_0, %c0_1] : memref<1x8x1xi32, #tpu.memory_space<vmem>>, vector<1x8x1xi32>
    %1 = tpu.iota {dimensions = array<i32: 2>} : vector<1x8x8xi32>
    %2 = vector.broadcast %0 : vector<1x8x1xi32> to vector<1x8x8xi32>
    %3 = arith.cmpi eq, %2, %1 : vector<1x8x8xi32>
    %4 = arith.extui %3 : vector<1x8x8xi1> to vector<1x8x8xi32>
    %5 = arith.sitofp %4 : vector<1x8x8xi32> to vector<1x8x8xf32>
    %c0_2 = arith.constant 0 : index
    %c0_3 = arith.constant 0 : index
    %c0_4 = arith.constant 0 : index
    %6 = vector.load %arg2[%c0_2, %c0_3, %c0_4] : memref<1x8x128xf32, #tpu.memory_space<vmem>>, vector<1x8x128xf32>
    "tpu.trace_start"() <{level = 10 : i32, message = "gik,gkd->gid"}> : () -> ()
    %cst = arith.constant dense<0.000000e+00> : vector<1x8x128xf32>
    %7 = tpu.matmul %5, %6, %cst {dimension_numbers = #tpu.dot_dimension_numbers<[2], [1], [1], [2], [0, 0, 0, 1, 1, 2], [0], [0]>, precision = #tpu.contract_precision<fp32>} : vector<1x8x8xf32>, vector<1x8x128xf32>, vector<1x8x128xf32> -> vector<1x8x128xf32>
    "tpu.trace_stop"() : () -> ()
    %c0_5 = arith.constant 0 : index
    %c0_6 = arith.constant 0 : index
    %c0_7 = arith.constant 0 : index
    %8 = vector.load %arg3[%c0_5, %c0_6, %c0_7] : memref<1x8x128xf32, #tpu.memory_space<vmem>>, vector<1x8x128xf32>
    tpu.vector_store %arg3[%c0_5, %c0_6, %c0_7], %7 {strides = array<i32>} : memref<1x8x128xf32, #tpu.memory_space<vmem>>, vector<1x8x128xf32>,
    return
  }
  func.func @transform_0(%arg0: i32) -> (i32, i32, i32) {
    %c0_i32 = arith.constant 0 : i32
    %c0_i32_0 = arith.constant 0 : i32
    %c0_i32_1 = arith.constant 0 : i32
    return %arg0, %c0_i32, %c0_i32_0 : i32, i32, i32
  }
  func.func @transform_1(%arg0: i32) -> (i32, i32, i32) {
    %c0_i32 = arith.constant 0 : i32
    %c0_i32_0 = arith.constant 0 : i32
    %c0_i32_1 = arith.constant 0 : i32
    return %arg0, %c0_i32, %c0_i32_0 : i32, i32, i32
  }
  func.func @transform_2(%arg0: i32) -> (i32, i32, i32) {
    %c0_i32 = arith.constant 0 : i32
    %c0_i32_0 = arith.constant 0 : i32
    %c0_i32_1 = arith.constant 0 : i32
    return %arg0, %c0_i32, %c0_i32_0 : i32, i32, i32
  }
}

</mosaic_0001>

<llo_original>
// kernel: tpu_custom_call.1
$region0: #{tpu_custom_call.1}
  #allocation0 [shape = 'u32[]', space=smem, size = 0x4, offset = 0x4, fixed_abs, tag = 'smem constant byte address 0x4 - core index']
  #allocation1 [shape = 'u32[144,128]{1,0:T(1,128)}', space=vmem, size = 0x12000, scoped, tag = 'internal scratch']
  %s0 = inlined_call_operand.vmem [shape: s32[2,8,1], index: 0, kind: input, shape index: {}]
  %s1 = inlined_call_operand.vmem [shape: f32[2,8,128], index: 1, kind: input, shape index: {}]
  %s2 = inlined_call_operand.hbm [shape: f32[2,8,128], index: 2, kind: output, shape index: {}]
  %s3 = sld [smem:[#allocation0]]
  $region41: #{tpu_custom_call.1} parent=0
    _
  %s5 = ssub.s32 1, %s3
  %s6 = scalar_select 0, %s5, %s3
  $region1: #{tpu_custom_call.1} parent=0
    #allocation2 [shape = 'u8[8192]{0}', space=vmem, size = 0x2000, scoped, tag = 'output window, operand 0']
    #allocation3 [shape = 's32[2]{0}', space=sflag, size = 0x8, scoped, tag = 'scoped memory for tpu_custom_call.1']
    %7 = vsyncpa [#allocation3], 0
    %s8 = scalar_lea.sflag [#allocation3], 1
    %9 = vsyncpa %s8, 0
    loop: start=0, step=1, limit=4
    $region2: #{tpu_custom_call.1} parent=1 // loop_pre_header
      _
    $region3: #{tpu_custom_call.1} parent=1 // loop_header
      %s11 = sphi 0, %s15
      %p12 = scmp.ge.s32.totalorder %s11, 4
      %s21 = sphi 0, %s23
      %s24 = sphi 0, %s21
      %s25 = sphi 0, %s24
      %s41 = sphi 0, %s25
      %s47 = sphi 0, %s49
      %s50 = sphi 0, %s47
      %s51 = sphi 0, %s50
      %s67 = sphi 0, %s51
      %s73 = sphi 0, %s75
      %s76 = sphi 0, %s73
      %s77 = sphi 0, %s76
      %s93 = sphi 0, %s77
    $region4: #{tpu_custom_call.1} parent=1 // loop_header_branch
      %14 = sbr.rel (%p12) target = $region8
    $region5: #{tpu_custom_call.1} parent=1 // loop_body
      %s16 = ssub.s32 %s11, 1
      %s17 = ssub.s32 %s11, 2
      %s18 = sadd.s32 %s11, 1
      %s19 = ssub.s32 %s11, %s18
      %p20 = scmp.eq.s32.totalorder %s19, 0
      %s22 = sadd.s32 %s21, 1
      %s23 = scalar_select %p20, %s21, %s22
      %p26 = pneg %p20
      %p27 = scmp.eq.s32.totalorder %s11, 1
      %p28 = por %p26, %p27
      %p29 = scmp.ne.s32.totalorder %s21, %s24
      %p30 = scmp.eq.s32.totalorder %s11, 0
      %p31 = por %p29, %p30
      %p32 = scmp.ne.s32.totalorder %s21, %s24
      %p33 = scmp.eq.s32.totalorder %s16, 1
      %p34 = por %p32, %p33
      %p35 = scmp.ne.s32.totalorder %s24, %s25
      %p36 = scmp.eq.s32.totalorder %s16, 0
      %p37 = por %p35, %p36
      %p38 = scmp.ne.s32.totalorder %s24, %s25
      %p39 = scmp.eq.s32.totalorder %s17, 1
      %p40 = por %p38, %p39
      %p42 = scmp.ne.s32.totalorder %s25, %s41
      %p43 = scmp.eq.s32.totalorder %s17, 0
      %p44 = por %p42, %p43
      %s45 = ssub.s32 %s11, %s18
      %p46 = scmp.eq.s32.totalorder %s45, 0
      %s48 = sadd.s32 %s47, 1
      %s49 = scalar_select %p46, %s47, %s48
      %p52 = pneg %p46
      %p53 = scmp.eq.s32.totalorder %s11, 1
      %p54 = por %p52, %p53
      %p55 = scmp.ne.s32.totalorder %s47, %s50
      %p56 = scmp.eq.s32.totalorder %s11, 0
      %p57 = por %p55, %p56
      %p58 = scmp.ne.s32.totalorder %s47, %s50
      %p59 = scmp.eq.s32.totalorder %s16, 1
      %p60 = por %p58, %p59
      %p61 = scmp.ne.s32.totalorder %s50, %s51
      %p62 = scmp.eq.s32.totalorder %s16, 0
      %p63 = por %p61, %p62
      %p64 = scmp.ne.s32.totalorder %s50, %s51
      %p65 = scmp.eq.s32.totalorder %s17, 1
      %p66 = por %p64, %p65
      %p68 = scmp.ne.s32.totalorder %s51, %s67
      %p69 = scmp.eq.s32.totalorder %s17, 0
      %p70 = por %p68, %p69
      %s71 = ssub.s32 %s11, %s18
      %p72 = scmp.eq.s32.totalorder %s71, 0
      %s74 = sadd.s32 %s73, 1
      %s75 = scalar_select %p72, %s73, %s74
      %p78 = pneg %p72
      %p79 = scmp.eq.s32.totalorder %s11, 1
      %p80 = por %p78, %p79
      %p81 = scmp.ne.s32.totalorder %s73, %s76
      %p82 = scmp.eq.s32.totalorder %s11, 0
      %p83 = por %p81, %p82
      %p84 = scmp.ne.s32.totalorder %s73, %s76
      %p85 = scmp.eq.s32.totalorder %s16, 1
      %p86 = por %p84, %p85
      %p87 = scmp.ne.s32.totalorder %s76, %s77
      %p88 = scmp.eq.s32.totalorder %s16, 0
      %p89 = por %p87, %p88
      %p90 = scmp.ne.s32.totalorder %s76, %s77
      %p91 = scmp.eq.s32.totalorder %s17, 1
      %p92 = por %p90, %p91
      %p94 = scmp.ne.s32.totalorder %s77, %s93
      %p95 = scmp.eq.s32.totalorder %s17, 0
      %p96 = por %p94, %p95
      %p97 = scmp.le.s32.totalorder 1, %s11
      %p98 = scmp.lt.s32.totalorder %s11, 3
      %p99 = pnand %p97, %p98
      %p100 = pneg %p99
      // Predicated region
      $region9: #{tpu_custom_call.1} parent=5 // pred_check
        _
      $region10: #{tpu_custom_call.1} parent=5 // pred_check_branch
        %102 = sbr.rel (%p99) target = $region12
      $region11: #{tpu_custom_call.1} parent=5 // pred_region
        %s103 = ssub.s32 %s11, 1
      $region12: #{tpu_custom_call.1} parent=5 // pred_fallthru
        _
      %p104 = scmp.lt.s32.totalorder %s11, 2
      // Predicated region
      $region13: #{tpu_custom_call.1} parent=5 // pred_check
        %p105 = pneg %p104
      $region14: #{tpu_custom_call.1} parent=5 // pred_check_branch
        %107 = sbr.rel (%p105) target = $region16
      $region15: #{tpu_custom_call.1} parent=5 // pred_region
        // Predicated region
        $region17: #{tpu_custom_call.1} parent=15 // pred_check
          %p108 = pneg %p31
        $region18: #{tpu_custom_call.1} parent=15 // pred_check_branch
          %110 = sbr.rel (%p108) target = $region20
        $region19: #{tpu_custom_call.1} parent=15 // pred_region
          %p111 = scmp.lt.s32.totalorder %s11, 1
          %s112 = scalar_select %p111, %s11, 1
          %s113 = smul.addr %s112, 8
          %s114 = scalar_lea.vmem %s0, %s113
        $region20: #{tpu_custom_call.1} parent=15 // pred_fallthru
          _
        // Predicated region
        $region21: #{tpu_custom_call.1} parent=15 // pred_check
          %p115 = pneg %p57
        $region22: #{tpu_custom_call.1} parent=15 // pred_check_branch
          %117 = sbr.rel (%p115) target = $region24
        $region23: #{tpu_custom_call.1} parent=15 // pred_region
          %p118 = scmp.lt.s32.totalorder %s11, 1
          %s119 = scalar_select %p118, %s11, 1
          %s120 = smul.addr %s119, 8
          %s121 = scalar_lea.vmem %s1, %s120
        $region24: #{tpu_custom_call.1} parent=15 // pred_fallthru
          _
      $region16: #{tpu_custom_call.1} parent=5 // pred_fallthru
        _
      %p122 = scmp.le.s32.totalorder 1, %s11
      %p123 = scmp.lt.s32.totalorder %s11, 3
      %p124 = pnand %p122, %p123
      %p125 = pneg %p124
      // Predicated region
      $region25: #{tpu_custom_call.1} parent=5 // pred_check
        _
      $region26: #{tpu_custom_call.1} parent=5 // pred_check_branch
        %127 = sbr.rel (%p124) target = $region28
      $region27: #{tpu_custom_call.1} parent=5 // pred_region
        %s128 = ssub.s32 %s11, 1
        %p129 = scmp.lt.s32.totalorder %s16, 1
        %s130 = scalar_select %p129, %s16, 1
        %s131 = smul.addr %s130, 8
        %s132 = scalar_lea.vmem %s0, %s131
        %p133 = pneg %p37
        %p134 = pneg %p34
        %p135 = scmp.lt.s32.totalorder %s16, 1
        %s136 = scalar_select %p135, %s16, 1
        %s137 = smul.addr %s136, 8
        %s138 = scalar_lea.vmem %s1, %s137
        %p139 = pneg %p63
        %p140 = pneg %p60
        %p141 = pneg %p89
        %p142 = pneg %p86
        %s143 = sand.u32 %s76, 1
        %s144 = scalar_lea.sflag [#allocation3], %s143
        %s145 = sand.u32 %s76, 1
        %s146 = smul.addr %s145, 8
        %s147 = scalar_lea.vmem [#allocation2], %s146
        %p148 = scmp.lt.s32.totalorder %s16, 1
        %s149 = scalar_select %p148, %s16, 1
        %s150 = smul.addr %s149, 8
        %s151 = scalar_lea.vmem %s0, %s150
        %p152 = scmp.lt.s32.totalorder %s16, 1
        %s153 = scalar_select %p152, %s16, 1
        %s154 = smul.addr %s153, 8
        %s155 = scalar_lea.vmem %s1, %s154
        %v156 = vld [vmem:[%s151] sm:$0xff]
        %v157 = vlaneseq
        %v158 = vand.u32 %v157, 127
        %159 = vset.pattern.permute.xlu0 0
        %160 = vperm.xlu0 %159, %v156
        %v161 = vpop.permute.xlu0 %160
        %vm162 = vcmp.eq.s32.totalorder %v161, %v158
        %v163 = vsel %vm162, 1, 0
        %v164 = vcvt.s32.f32 %v163
        %v165 = vld [vmem:[%s155] sm:$0xff]
        %vm166 = vcmask 64512
        %v168 = vsel %vm166, %v164, 0
        %170 = vmatprep.subr.mxu0 0.0
        %171 = vmatpush1.msra.mxu0 0.0
        %172 = vmatprep.subr.mxu0 0.0
        %173 = vmatpush1.msra.mxu0 0.0
        %174 = vmatprep.subr.mxu0 0.0
        %175 = vmatpush1.msra.mxu0 0.0
        %176 = vmatprep.subr.mxu0 0.0
        %177 = vmatpush1.msra.mxu0 0.0
        %178 = vmatprep.subr.mxu0 0.0
        %179 = vmatpush1.msra.mxu0 0.0
        %180 = vmatprep.subr.mxu0 0.0
        %181 = vmatpush1.msra.mxu0 0.0
        %182 = vmatprep.subr.mxu0 0.0
        %183 = vmatpush1.msra.mxu0 0.0
        %184 = vmatprep.subr.mxu0 0.0
        %185 = vmatpush1.msra.mxu0 0.0
        %186 = vmatprep.subr.mxu0 0.0
        %187 = vmatpush1.msra.mxu0 0.0
        %188 = vmatprep.subr.mxu0 0.0
        %189 = vmatpush1.msra.mxu0 0.0
        %190 = vmatprep.subr.mxu0 0.0
        %191 = vmatpush1.msra.mxu0 0.0
        %192 = vmatprep.subr.mxu0 0.0
        %193 = vmatpush1.msra.mxu0 0.0
        %194 = vmatprep.subr.mxu0 0.0
        %195 = vmatpush1.msra.mxu0 0.0
        %196 = vmatprep.subr.mxu0 0.0
        %197 = vmatpush1.msra.mxu0 0.0
        %198 = vmatprep.subr.mxu0 0.0
        %199 = vmatpush1.msra.mxu0 0.0
        %200 = vmatprep.subr.mxu0 0.0
        %v201 = vand.u32 %v165, 4294901760
        %202 = vmatpush1.msra.mxu0 %v201
        %203 = vmatprep.subr.mxu0 0.0
        %204 = vmatpush2.msra.mxu0 0.0
        %205 = vmatprep.subr.mxu0 0.0
        %206 = vmatpush2.msra.mxu0 0.0
        %207 = vmatprep.subr.mxu0 0.0
        %208 = vmatpush2.msra.mxu0 0.0
        %209 = vmatprep.subr.mxu0 0.0
        %210 = vmatpush2.msra.mxu0 0.0
        %211 = vmatprep.subr.mxu0 0.0
        %212 = vmatpush2.msra.mxu0 0.0
        %213 = vmatprep.subr.mxu0 0.0
        %214 = vmatpush2.msra.mxu0 0.0
        %215 = vmatprep.subr.mxu0 0.0
        %216 = vmatpush2.msra.mxu0 0.0
        %217 = vmatprep.subr.mxu0 0.0
        %218 = vmatpush2.msra.mxu0 0.0
        %219 = vmatprep.subr.mxu0 0.0
        %220 = vmatpush2.msra.mxu0 0.0
        %221 = vmatprep.subr.mxu0 0.0
        %222 = vmatpush2.msra.mxu0 0.0
        %223 = vmatprep.subr.mxu0 0.0
        %224 = vmatpush2.msra.mxu0 0.0
        %225 = vmatprep.subr.mxu0 0.0
        %226 = vmatpush2.msra.mxu0 0.0
        %227 = vmatprep.subr.mxu0 0.0
        %228 = vmatpush2.msra.mxu0 0.0
        %229 = vmatprep.subr.mxu0 0.0
        %230 = vmatpush2.msra.mxu0 0.0
        %231 = vmatprep.subr.mxu0 0.0
        %232 = vmatpush2.msra.mxu0 0.0
        %233 = vmatprep.subr.mxu0 0.0
        %234 = vmatpush2.msra.mxu0 0.0
        %235 = vmatprep.mubr.f32.mxu0 0.0
        %v236 = vand.u32 %v168, 4294901760
        %v237 = vsub.f32 %v168, %v236
        %v238 = vand.u32 %v237, 4294901760
        %v239 = vsub.f32 %v237, %v238
        %v240 = vand.u32 %v239, 4294901760
        %241 = vmatmul.mubr.f32.gmra.mxu0 %v240
        %v242 = vpop.f32.mrf.mxu0
        %v243 = vadd.f32 0.0, %v242
        %v244 = vpop.f32.mrf.mxu0
        %245 = vdwg.mxu0
        %246 = vmatprep.subr.mxu0 0.0
        %247 = vmatpush1.msra.mxu0 0.0
        %248 = vmatprep.subr.mxu0 0.0
        %249 = vmatpush1.msra.mxu0 0.0
        %250 = vmatprep.subr.mxu0 0.0
        %251 = vmatpush1.msra.mxu0 0.0
        %252 = vmatprep.subr.mxu0 0.0
        %253 = vmatpush1.msra.mxu0 0.0
        %254 = vmatprep.subr.mxu0 0.0
        %255 = vmatpush1.msra.mxu0 0.0
        %256 = vmatprep.subr.mxu0 0.0
        %257 = vmatpush1.msra.mxu0 0.0
        %258 = vmatprep.subr.mxu0 0.0
        %259 = vmatpush1.msra.mxu0 0.0
        %260 = vmatprep.subr.mxu0 0.0
        %261 = vmatpush1.msra.mxu0 0.0
        %262 = vmatprep.subr.mxu0 0.0
        %263 = vmatpush1.msra.mxu0 0.0
        %264 = vmatprep.subr.mxu0 0.0
        %265 = vmatpush1.msra.mxu0 0.0
        %266 = vmatprep.subr.mxu0 0.0
        %267 = vmatpush1.msra.mxu0 0.0
        %268 = vmatprep.subr.mxu0 0.0
        %269 = vmatpush1.msra.mxu0 0.0
        %270 = vmatprep.subr.mxu0 0.0
        %271 = vmatpush1.msra.mxu0 0.0
        %272 = vmatprep.subr.mxu0 0.0
        %273 = vmatpush1.msra.mxu0 0.0
        %274 = vmatprep.subr.mxu0 0.0
        %275 = vmatpush1.msra.mxu0 0.0
        %276 = vmatprep.subr.mxu0 0.0
        %v277 = vand.u32 %v165, 4294901760
        %v278 = vsub.f32 %v165, %v277
        %v279 = vand.u32 %v278, 4294901760
        %v280 = vsub.f32 %v278, %v279
        %v281 = vand.u32 %v280, 4294901760
        %282 = vmatpush1.msra.mxu0 %v281
        %283 = vmatprep.subr.mxu0 0.0
        %284 = vmatpush2.msra.mxu0 0.0
        %285 = vmatprep.subr.mxu0 0.0
        %286 = vmatpush2.msra.mxu0 0.0
        %287 = vmatprep.subr.mxu0 0.0
        %288 = vmatpush2.msra.mxu0 0.0
        %289 = vmatprep.subr.mxu0 0.0
        %290 = vmatpush2.msra.mxu0 0.0
        %291 = vmatprep.subr.mxu0 0.0
        %292 = vmatpush2.msra.mxu0 0.0
        %293 = vmatprep.subr.mxu0 0.0
        %294 = vmatpush2.msra.mxu0 0.0
        %295 = vmatprep.subr.mxu0 0.0
        %296 = vmatpush2.msra.mxu0 0.0
        %297 = vmatprep.subr.mxu0 0.0
        %298 = vmatpush2.msra.mxu0 0.0
        %299 = vmatprep.subr.mxu0 0.0
        %300 = vmatpush2.msra.mxu0 0.0
        %301 = vmatprep.subr.mxu0 0.0
        %302 = vmatpush2.msra.mxu0 0.0
        %303 = vmatprep.subr.mxu0 0.0
        %304 = vmatpush2.msra.mxu0 0.0
        %305 = vmatprep.subr.mxu0 0.0
        %306 = vmatpush2.msra.mxu0 0.0
        %307 = vmatprep.subr.mxu0 0.0
        %308 = vmatpush2.msra.mxu0 0.0
        %309 = vmatprep.subr.mxu0 0.0
        %310 = vmatpush2.msra.mxu0 0.0
        %311 = vmatprep.subr.mxu0 0.0
        %312 = vmatpush2.msra.mxu0 0.0
        %313 = vmatprep.subr.mxu0 0.0
        %314 = vmatpush2.msra.mxu0 0.0
        %315 = vmatprep.mubr.f32.mxu0 0.0
        %v316 = vand.u32 %v168, 4294901760
        %317 = vmatmul.mubr.f32.gmra.mxu0 %v316
        %v318 = vpop.f32.mrf.mxu0
        %v319 = vadd.f32 %v243, %v318
        %v320 = vpop.f32.mrf.mxu0
        %321 = vdwg.mxu0
        %322 = vmatprep.subr.mxu0 0.0
        %323 = vmatpush1.msra.mxu0 0.0
        %324 = vmatprep.subr.mxu0 0.0
        %325 = vmatpush1.msra.mxu0 0.0
        %326 = vmatprep.subr.mxu0 0.0
        %327 = vmatpush1.msra.mxu0 0.0
        %328 = vmatprep.subr.mxu0 0.0
        %329 = vmatpush1.msra.mxu0 0.0
        %330 = vmatprep.subr.mxu0 0.0
        %331 = vmatpush1.msra.mxu0 0.0
        %332 = vmatprep.subr.mxu0 0.0
        %333 = vmatpush1.msra.mxu0 0.0
        %334 = vmatprep.subr.mxu0 0.0
        %335 = vmatpush1.msra.mxu0 0.0
        %336 = vmatprep.subr.mxu0 0.0
        %337 = vmatpush1.msra.mxu0 0.0
        %338 = vmatprep.subr.mxu0 0.0
        %339 = vmatpush1.msra.mxu0 0.0
        %340 = vmatprep.subr.mxu0 0.0
        %341 = vmatpush1.msra.mxu0 0.0
        %342 = vmatprep.subr.mxu0 0.0
        %343 = vmatpush1.msra.mxu0 0.0
        %344 = vmatprep.subr.mxu0 0.0
        %345 = vmatpush1.msra.mxu0 0.0
        %346 = vmatprep.subr.mxu0 0.0
        %347 = vmatpush1.msra.mxu0 0.0
        %348 = vmatprep.subr.mxu0 0.0
        %349 = vmatpush1.msra.mxu0 0.0
        %350 = vmatprep.subr.mxu0 0.0
        %351 = vmatpush1.msra.mxu0 0.0
        %352 = vmatprep.subr.mxu0 0.0
        %v353 = vand.u32 %v165, 4294901760
        %v354 = vsub.f32 %v165, %v353
        %355 = vmatpush1.msra.mxu0 %v354
        %356 = vmatprep.subr.mxu0 0.0
        %357 = vmatpush2.msra.mxu0 0.0
        %358 = vmatprep.subr.mxu0 0.0
        %359 = vmatpush2.msra.mxu0 0.0
        %360 = vmatprep.subr.mxu0 0.0
        %361 = vmatpush2.msra.mxu0 0.0
        %362 = vmatprep.subr.mxu0 0.0
        %363 = vmatpush2.msra.mxu0 0.0
        %364 = vmatprep.subr.mxu0 0.0
        %365 = vmatpush2.msra.mxu0 0.0
        %366 = vmatprep.subr.mxu0 0.0
        %367 = vmatpush2.msra.mxu0 0.0
        %368 = vmatprep.subr.mxu0 0.0
        %369 = vmatpush2.msra.mxu0 0.0
        %370 = vmatprep.subr.mxu0 0.0
        %371 = vmatpush2.msra.mxu0 0.0
        %372 = vmatprep.subr.mxu0 0.0
        %373 = vmatpush2.msra.mxu0 0.0
        %374 = vmatprep.subr.mxu0 0.0
        %375 = vmatpush2.msra.mxu0 0.0
        %376 = vmatprep.subr.mxu0 0.0
        %377 = vmatpush2.msra.mxu0 0.0
        %378 = vmatprep.subr.mxu0 0.0
        %379 = vmatpush2.msra.mxu0 0.0
        %380 = vmatprep.subr.mxu0 0.0
        %381 = vmatpush2.msra.mxu0 0.0
        %382 = vmatprep.subr.mxu0 0.0
        %383 = vmatpush2.msra.mxu0 0.0
        %384 = vmatprep.subr.mxu0 0.0
        %385 = vmatpush2.msra.mxu0 0.0
        %386 = vmatprep.subr.mxu0 0.0
        %387 = vmatpush2.msra.mxu0 0.0
        %388 = vmatprep.mubr.f32.mxu0 0.0
        %v389 = vand.u32 %v168, 4294901760
        %v390 = vsub.f32 %v168, %v389
        %391 = vmatmul.mubr.f32.gmra.mxu0 %v390
        %v392 = vpop.f32.mrf.mxu0
        %v393 = vadd.f32 %v319, %v392
        %v394 = vpop.f32.mrf.mxu0
        %395 = vdwg.mxu0
        %396 = vmatprep.subr.mxu0 0.0
        %397 = vmatpush1.msra.mxu0 0.0
        %398 = vmatprep.subr.mxu0 0.0
        %399 = vmatpush1.msra.mxu0 0.0
        %400 = vmatprep.subr.mxu0 0.0
        %401 = vmatpush1.msra.mxu0 0.0
        %402 = vmatprep.subr.mxu0 0.0
        %403 = vmatpush1.msra.mxu0 0.0
        %404 = vmatprep.subr.mxu0 0.0
        %405 = vmatpush1.msra.mxu0 0.0
        %406 = vmatprep.subr.mxu0 0.0
        %407 = vmatpush1.msra.mxu0 0.0
        %408 = vmatprep.subr.mxu0 0.0
        %409 = vmatpush1.msra.mxu0 0.0
        %410 = vmatprep.subr.mxu0 0.0
        %411 = vmatpush1.msra.mxu0 0.0
        %412 = vmatprep.subr.mxu0 0.0
        %413 = vmatpush1.msra.mxu0 0.0
        %414 = vmatprep.subr.mxu0 0.0
        %415 = vmatpush1.msra.mxu0 0.0
        %416 = vmatprep.subr.mxu0 0.0
        %417 = vmatpush1.msra.mxu0 0.0
        %418 = vmatprep.subr.mxu0 0.0
        %419 = vmatpush1.msra.mxu0 0.0
        %420 = vmatprep.subr.mxu0 0.0
        %421 = vmatpush1.msra.mxu0 0.0
        %422 = vmatprep.subr.mxu0 0.0
        %423 = vmatpush1.msra.mxu0 0.0
        %424 = vmatprep.subr.mxu0 0.0
        %425 = vmatpush1.msra.mxu0 0.0
        %426 = vmatprep.subr.mxu0 0.0
        %v427 = vand.u32 %v165, 4294901760
        %428 = vmatpush1.msra.mxu0 %v427
        %429 = vmatprep.subr.mxu0 0.0
        %430 = vmatpush2.msra.mxu0 0.0
        %431 = vmatprep.subr.mxu0 0.0
        %432 = vmatpush2.msra.mxu0 0.0
        %433 = vmatprep.subr.mxu0 0.0
        %434 = vmatpush2.msra.mxu0 0.0
        %435 = vmatprep.subr.mxu0 0.0
        %436 = vmatpush2.msra.mxu0 0.0
        %437 = vmatprep.subr.mxu0 0.0
        %438 = vmatpush2.msra.mxu0 0.0
        %439 = vmatprep.subr.mxu0 0.0
        %440 = vmatpush2.msra.mxu0 0.0
        %441 = vmatprep.subr.mxu0 0.0
        %442 = vmatpush2.msra.mxu0 0.0
        %443 = vmatprep.subr.mxu0 0.0
        %444 = vmatpush2.msra.mxu0 0.0
        %445 = vmatprep.subr.mxu0 0.0
        %446 = vmatpush2.msra.mxu0 0.0
        %447 = vmatprep.subr.mxu0 0.0
        %448 = vmatpush2.msra.mxu0 0.0
        %449 = vmatprep.subr.mxu0 0.0
        %450 = vmatpush2.msra.mxu0 0.0
        %451 = vmatprep.subr.mxu0 0.0
        %452 = vmatpush2.msra.mxu0 0.0
        %453 = vmatprep.subr.mxu0 0.0
        %454 = vmatpush2.msra.mxu0 0.0
        %455 = vmatprep.subr.mxu0 0.0
        %456 = vmatpush2.msra.mxu0 0.0
        %457 = vmatprep.subr.mxu0 0.0
        %458 = vmatpush2.msra.mxu0 0.0
        %459 = vmatprep.subr.mxu0 0.0
        %460 = vmatpush2.msra.mxu0 0.0
        %461 = vmatprep.mubr.f32.mxu0 0.0
        %v462 = vand.u32 %v168, 4294901760
        %v463 = vsub.f32 %v168, %v462
        %v464 = vand.u32 %v463, 4294901760
        %465 = vmatmul.mubr.f32.gmra.mxu0 %v464
        %v466 = vpop.f32.mrf.mxu0
        %v467 = vadd.f32 %v393, %v466
        %v468 = vpop.f32.mrf.mxu0
        %469 = vdwg.mxu0
        %470 = vmatprep.subr.mxu0 0.0
        %471 = vmatpush1.msra.mxu0 0.0
        %472 = vmatprep.subr.mxu0 0.0
        %473 = vmatpush1.msra.mxu0 0.0
        %474 = vmatprep.subr.mxu0 0.0
        %475 = vmatpush1.msra.mxu0 0.0
        %476 = vmatprep.subr.mxu0 0.0
        %477 = vmatpush1.msra.mxu0 0.0
        %478 = vmatprep.subr.mxu0 0.0
        %479 = vmatpush1.msra.mxu0 0.0
        %480 = vmatprep.subr.mxu0 0.0
        %481 = vmatpush1.msra.mxu0 0.0
        %482 = vmatprep.subr.mxu0 0.0
        %483 = vmatpush1.msra.mxu0 0.0
        %484 = vmatprep.subr.mxu0 0.0
        %485 = vmatpush1.msra.mxu0 0.0
        %486 = vmatprep.subr.mxu0 0.0
        %487 = vmatpush1.msra.mxu0 0.0
        %488 = vmatprep.subr.mxu0 0.0
        %489 = vmatpush1.msra.mxu0 0.0
        %490 = vmatprep.subr.mxu0 0.0
        %491 = vmatpush1.msra.mxu0 0.0
        %492 = vmatprep.subr.mxu0 0.0
        %493 = vmatpush1.msra.mxu0 0.0
        %494 = vmatprep.subr.mxu0 0.0
        %495 = vmatpush1.msra.mxu0 0.0
        %496 = vmatprep.subr.mxu0 0.0
        %497 = vmatpush1.msra.mxu0 0.0
        %498 = vmatprep.subr.mxu0 0.0
        %499 = vmatpush1.msra.mxu0 0.0
        %500 = vmatprep.subr.mxu0 0.0
        %v501 = vand.u32 %v165, 4294901760
        %v502 = vsub.f32 %v165, %v501
        %v503 = vand.u32 %v502, 4294901760
        %504 = vmatpush1.msra.mxu0 %v503
        %505 = vmatprep.subr.mxu0 0.0
        %506 = vmatpush2.msra.mxu0 0.0
        %507 = vmatprep.subr.mxu0 0.0
        %508 = vmatpush2.msra.mxu0 0.0
        %509 = vmatprep.subr.mxu0 0.0
        %510 = vmatpush2.msra.mxu0 0.0
        %511 = vmatprep.subr.mxu0 0.0
        %512 = vmatpush2.msra.mxu0 0.0
        %513 = vmatprep.subr.mxu0 0.0
        %514 = vmatpush2.msra.mxu0 0.0
        %515 = vmatprep.subr.mxu0 0.0
        %516 = vmatpush2.msra.mxu0 0.0
        %517 = vmatprep.subr.mxu0 0.0
        %518 = vmatpush2.msra.mxu0 0.0
        %519 = vmatprep.subr.mxu0 0.0
        %520 = vmatpush2.msra.mxu0 0.0
        %521 = vmatprep.subr.mxu0 0.0
        %522 = vmatpush2.msra.mxu0 0.0
        %523 = vmatprep.subr.mxu0 0.0
        %524 = vmatpush2.msra.mxu0 0.0
        %525 = vmatprep.subr.mxu0 0.0
        %526 = vmatpush2.msra.mxu0 0.0
        %527 = vmatprep.subr.mxu0 0.0
        %528 = vmatpush2.msra.mxu0 0.0
        %529 = vmatprep.subr.mxu0 0.0
        %530 = vmatpush2.msra.mxu0 0.0
        %531 = vmatprep.subr.mxu0 0.0
        %532 = vmatpush2.msra.mxu0 0.0
        %533 = vmatprep.subr.mxu0 0.0
        %534 = vmatpush2.msra.mxu0 0.0
        %535 = vmatprep.subr.mxu0 0.0
        %536 = vmatpush2.msra.mxu0 0.0
        %537 = vmatprep.mubr.f32.mxu0 0.0
        %v538 = vand.u32 %v168, 4294901760
        %539 = vmatmul.mubr.f32.gmra.mxu0 %v538
        %v540 = vpop.f32.mrf.mxu0
        %v541 = vadd.f32 %v467, %v540
        %v542 = vpop.f32.mrf.mxu0
        %543 = vdwg.mxu0
        %544 = vmatprep.subr.mxu0 0.0
        %545 = vmatpush1.msra.mxu0 0.0
        %546 = vmatprep.subr.mxu0 0.0
        %547 = vmatpush1.msra.mxu0 0.0
        %548 = vmatprep.subr.mxu0 0.0
        %549 = vmatpush1.msra.mxu0 0.0
        %550 = vmatprep.subr.mxu0 0.0
        %551 = vmatpush1.msra.mxu0 0.0
        %552 = vmatprep.subr.mxu0 0.0
        %553 = vmatpush1.msra.mxu0 0.0
        %554 = vmatprep.subr.mxu0 0.0
        %555 = vmatpush1.msra.mxu0 0.0
        %556 = vmatprep.subr.mxu0 0.0
        %557 = vmatpush1.msra.mxu0 0.0
        %558 = vmatprep.subr.mxu0 0.0
        %559 = vmatpush1.msra.mxu0 0.0
        %560 = vmatprep.subr.mxu0 0.0
        %561 = vmatpush1.msra.mxu0 0.0
        %562 = vmatprep.subr.mxu0 0.0
        %563 = vmatpush1.msra.mxu0 0.0
        %564 = vmatprep.subr.mxu0 0.0
        %565 = vmatpush1.msra.mxu0 0.0
        %566 = vmatprep.subr.mxu0 0.0
        %567 = vmatpush1.msra.mxu0 0.0
        %568 = vmatprep.subr.mxu0 0.0
        %569 = vmatpush1.msra.mxu0 0.0
        %570 = vmatprep.subr.mxu0 0.0
        %571 = vmatpush1.msra.mxu0 0.0
        %572 = vmatprep.subr.mxu0 0.0
        %573 = vmatpush1.msra.mxu0 0.0
        %574 = vmatprep.subr.mxu0 0.0
        %v575 = vand.u32 %v165, 4294901760
        %576 = vmatpush1.msra.mxu0 %v575
        %577 = vmatprep.subr.mxu0 0.0
        %578 = vmatpush2.msra.mxu0 0.0
        %579 = vmatprep.subr.mxu0 0.0
        %580 = vmatpush2.msra.mxu0 0.0
        %581 = vmatprep.subr.mxu0 0.0
        %582 = vmatpush2.msra.mxu0 0.0
        %583 = vmatprep.subr.mxu0 0.0
        %584 = vmatpush2.msra.mxu0 0.0
        %585 = vmatprep.subr.mxu0 0.0
        %586 = vmatpush2.msra.mxu0 0.0
        %587 = vmatprep.subr.mxu0 0.0
        %588 = vmatpush2.msra.mxu0 0.0
        %589 = vmatprep.subr.mxu0 0.0
        %590 = vmatpush2.msra.mxu0 0.0
        %591 = vmatprep.subr.mxu0 0.0
        %592 = vmatpush2.msra.mxu0 0.0
        %593 = vmatprep.subr.mxu0 0.0
        %594 = vmatpush2.msra.mxu0 0.0
        %595 = vmatprep.subr.mxu0 0.0
        %596 = vmatpush2.msra.mxu0 0.0
        %597 = vmatprep.subr.mxu0 0.0
        %598 = vmatpush2.msra.mxu0 0.0
        %599 = vmatprep.subr.mxu0 0.0
        %600 = vmatpush2.msra.mxu0 0.0
        %601 = vmatprep.subr.mxu0 0.0
        %602 = vmatpush2.msra.mxu0 0.0
        %603 = vmatprep.subr.mxu0 0.0
        %604 = vmatpush2.msra.mxu0 0.0
        %605 = vmatprep.subr.mxu0 0.0
        %606 = vmatpush2.msra.mxu0 0.0
        %607 = vmatprep.subr.mxu0 0.0
        %608 = vmatpush2.msra.mxu0 0.0
        %609 = vmatprep.mubr.f32.mxu0 0.0
        %v610 = vand.u32 %v168, 4294901760
        %611 = vmatmul.mubr.f32.gmra.mxu0 %v610
        %v612 = vpop.f32.mrf.mxu0
        %v613 = vadd.f32 %v541, %v612
        %v614 = vpop.f32.mrf.mxu0
        %615 = vdwg.mxu0
        %616 = vst [vmem:[%s147] sm:$0xff] %v613
        %s617 = sand.u32 %s76, 1
        %s618 = scalar_lea.sflag [#allocation3], %s617
        %s619 = sand.u32 %s76, 1
        %s620 = smul.addr %s619, 8
        %s621 = scalar_lea.vmem [#allocation2], %s620
        // Predicated region
        $region29: #{tpu_custom_call.1} parent=27 // pred_check
          %p622 = pneg %p86
        $region30: #{tpu_custom_call.1} parent=27 // pred_check_branch
          %624 = sbr.rel (%p622) target = $region32
        $region31: #{tpu_custom_call.1} parent=27 // pred_region
          %s626 = ssub.s32 128, 128
          %627 = vsyncadd %s618, %s626
          %s628 = smul.addr %s16, 128
          %s629 = scalar_lea.hbm %s2, %s628
          %s631 = sshll.u32 %s621, 4
          %s632 = int_to_ptr.vmem [resolvable:$true] %s631
          %634 = dma.vmem_to_hbm [thread:$0]  %s632, 128, %s629, %s618
        $region32: #{tpu_custom_call.1} parent=27 // pred_fallthru
          _
      $region28: #{tpu_custom_call.1} parent=5 // pred_fallthru
        _
      %p635 = scmp.le.s32.totalorder 2, %s11
      // Predicated region
      $region33: #{tpu_custom_call.1} parent=5 // pred_check
        %p636 = pneg %p635
      $region34: #{tpu_custom_call.1} parent=5 // pred_check_branch
        %638 = sbr.rel (%p636) target = $region36
      $region35: #{tpu_custom_call.1} parent=5 // pred_region
        %s639 = ssub.s32 %s11, 2
        // Predicated region
        $region37: #{tpu_custom_call.1} parent=35 // pred_check
          %p640 = pneg %p92
        $region38: #{tpu_custom_call.1} parent=35 // pred_check_branch
          %642 = sbr.rel (%p640) target = $region40
        $region39: #{tpu_custom_call.1} parent=35 // pred_region
          %s643 = sand.u32 %s77, 1
          %s644 = scalar_lea.sflag [#allocation3], %s643
          %s645 = sand.u32 %s77, 1
          %s646 = smul.addr %s645, 8
          %s647 = scalar_lea.vmem [#allocation2], %s646
          %648 = dma.done %s644, 128
        $region40: #{tpu_custom_call.1} parent=35 // pred_fallthru
          _
      $region36: #{tpu_custom_call.1} parent=5 // pred_fallthru
        _
    $region6: #{tpu_custom_call.1} parent=1 // loop_footer
      %s15 = sadd.s32 1, %s11
    $region7: #{tpu_custom_call.1} parent=1 // loop_footer_branch
      %10 = sbr.rel target = $region3
    $region8: #{tpu_custom_call.1} parent=1 // loop_exit
      _
    %649 = vsyncpa [#allocation3], 1
    %s650 = scalar_lea.sflag [#allocation3], 1
    %651 = vsyncpa %s650, 1

</llo_original>
